<compile_context>
chip_gen: v7x
topology: tpu7x:2x2x1
jax: 0.10.0
libtpu: 0.0.40
codegen_flags: <defaults>
</compile_context>

<pallas_src>
import functools
import jax
import jax.numpy as jnp
from jax.experimental import pallas as pl
from jax.experimental.pallas import tpu as pltpu

_LANE = 128


def _round_up(x, m):
    return ((x + m - 1) // m) * m


def _largest_aligned_divisor(total, unit, cap):
    """Largest multiple of `unit` dividing `total` with value <= cap.
    Requires total % unit == 0; falls back to `unit`."""
    q = total // unit
    best = 1
    d = 1
    while d * d <= q:
        if q % d == 0:
            for c in (d, q // d):
                if c * unit <= cap and c > best:
                    best = c
        d += 1
    return best * unit


def _apply_act(y, act, negative_slope):
    if act is None or act == "identity":
        return y
    if act == "relu":
        return jnp.maximum(y, 0.0)
    if act == "relu6":
        return jnp.clip(y, 0.0, 6.0)
    if act == "leaky":
        return jnp.where(y >= 0.0, y, negative_slope * y)
    raise Exception("Error")  # mirrors the PyTorch module's raise (trace-time)


def _ff_kernel_multi_k(x_ref, w_ref, b_ref, o_ref, acc_ref, *, act,
                       negative_slope):
    k = pl.program_id(2)

    @pl.when(k == 0)
    def _init():
        acc_ref[...] = jnp.zeros_like(acc_ref)

    # MXU matmul, f32 accumulation regardless of operand dtype.
    acc_ref[...] += jnp.dot(x_ref[...], w_ref[...],
                            preferred_element_type=jnp.float32)

    @pl.when(k == pl.num_programs(2) - 1)
    def _finalize():
        y = acc_ref[...] + b_ref[...].astype(jnp.float32)   # (tm,tn) + (1,tn)
        y = _apply_act(y, act, negative_slope)               # VPU, f32
        o_ref[...] = y.astype(o_ref.dtype)


def _ff_kernel_single_k(x_ref, w_ref, b_ref, o_ref, *, act, negative_slope):
    # Fast path when the whole K fits one tile: no scratch accumulator.
    y = jnp.dot(x_ref[...], w_ref[...], preferred_element_type=jnp.float32)
    y = y + b_ref[...].astype(jnp.float32)
    y = _apply_act(y, act, negative_slope)
    o_ref[...] = y.astype(o_ref.dtype)


def prepare_ffn_params(w_pt, bias=None, *, dtype=jnp.bfloat16):
    """One-time (init-time) parameter prep — NOT per forward call.

    w_pt: PyTorch-layout weight (out_feat, in_feat).
    Returns (w_t, b, out_feat): w_t transposed to (K, N), zero-padded to lane
    multiples and cast to `dtype`; b is (1, Npad) f32 (or None); out_feat is
    the logical output width for the final slice."""
    w_pt = jnp.asarray(w_pt)
    out_feat, in_feat = w_pt.shape
    Kp, Np = _round_up(in_feat, _LANE), _round_up(out_feat, _LANE)
    w_t = w_pt.T
    if (Kp, Np) != (in_feat, out_feat):
        w_t = jnp.pad(w_t, ((0, Kp - in_feat), (0, Np - out_feat)))
    w_t = w_t.astype(dtype)
    if bias is None:
        b = None
    else:
        b = jnp.asarray(bias).reshape(1, -1).astype(jnp.float32)
        if b.shape[1] != Np:
            b = jnp.pad(b, ((0, 0), (0, Np - b.shape[1])))
    return w_t, b, out_feat


def feed_forward_layer(x, w_t, b=None, *, out_feat=None, act=None,
                       negative_slope=0.01, tile_m=512, tile_n=1024,
                       tile_k=1024, compute_dtype=None):
    """x: (M, in_feat). w_t: (K, N) weight (ideally from prepare_ffn_params).
    b: (1, N) f32 or None. Returns (M, out_feat) in x.dtype."""
    M, K = x.shape
    Kw, Nw = w_t.shape
    assert K <= Kw, "x feature dim exceeds weight in_features"
    N = int(out_feat) if out_feat is not None else Nw
    out_dtype = x.dtype

    # Operand dtype follows the (prepared) weight unless overridden.
    if compute_dtype is None:
        compute_dtype = w_t.dtype
    compute_dtype = jnp.dtype(compute_dtype)

    # Fallback pad/cast for un-prepared weights (no-op on the prepared path).
    Kp, Np = _round_up(Kw, _LANE), _round_up(Nw, _LANE)
    if (Kp, Np) != (Kw, Nw):
        w_t = jnp.pad(w_t, ((0, Kp - Kw), (0, Np - Nw)))
    if w_t.dtype != compute_dtype:
        w_t = w_t.astype(compute_dtype)

    if b is None:
        b = jnp.zeros((1, Np), jnp.float32)
    else:
        b = jnp.asarray(b).reshape(1, -1).astype(jnp.float32)
        if b.shape[1] != Np:
            b = jnp.pad(b, ((0, 0), (0, Np - b.shape[1])))

    if x.dtype != compute_dtype:
        x = x.astype(compute_dtype)
    # K must be zero-padded so padded columns contribute nothing to the sum.
    if K != Kp:
        x = jnp.pad(x, ((0, 0), (0, Kp - K)))

    cb = compute_dtype.itemsize
    ob = jnp.dtype(out_dtype).itemsize
    sub = 8 * max(1, 4 // cb)            # preferred sublane packing alignment

    # Tile selection: tn/tk exactly divide padded N/K (lane-dense stores, no
    # masked edge); M uses a cdiv grid with ragged edge blocks (no pad pass).
    if M <= 1024:
        tm = _round_up(M, 8)             # gm == 1: weight streamed exactly once
    else:
        tm = _round_up(min(tile_m, M), sub)
    tn = _largest_aligned_divisor(Np, _LANE, max(_LANE, tile_n))
    tk = _largest_aligned_divisor(Kp, _LANE, max(_LANE, tile_k))

    # Generation-aware VMEM budget (v7x: 64 MiB/TC, v5e/v6e: 128 MiB).
    try:
        vmem_cap = int(pltpu.get_tpu_info().vmem_capacity_bytes)
    except Exception:
        vmem_cap = 64 * 1024 * 1024
    budget = int(vmem_cap * 0.8)

    def _est(tm_, tn_, tk_, gk_):
        return (2 * (tm_ * tk_ + tk_ * tn_) * cb      # double-buffered x, W
                + 2 * tn_ * 4                          # bias
                + 2 * tm_ * tn_ * ob                   # double-buffered out
                + (tm_ * tn_ * 4 if gk_ > 1 else 0))   # f32 accumulator

    while True:
        gk = Kp // tk
        if _est(tm, tn, tk, gk) <= budget:
            break
        if tk * tn >= tm * tk and tn > _LANE:
            tn = _largest_aligned_divisor(Np, _LANE, tn // 2)
        elif tk > _LANE:
            tk = _largest_aligned_divisor(Kp, _LANE, tk // 2)
        elif tm > 8:
            tm = max(8, (tm // 16) * 8)
        else:
            break

    gm, gn, gk = pl.cdiv(M, tm), Np // tn, Kp // tk

    cost = pl.CostEstimate(
        flops=2 * M * Kp * Np,
        transcendentals=0,
        bytes_accessed=(M * Kp * cb + Kp * Np * cb + Np * 4 + M * Np * ob),
    )

    # TODO(synk): optional pipeline_mode=pl.Buffered(3) on the W spec for v5e
    # if the per-step weight DMA is still exposed after tile enlargement.
    if gk == 1:
        kernel = functools.partial(_ff_kernel_single_k, act=act,
                                   negative_slope=negative_slope)
        dims = ("arbitrary" if gm == 1 else "parallel", "parallel")
        out = pl.pallas_call(
            kernel,
            out_shape=jax.ShapeDtypeStruct((M, Np), out_dtype),
            grid_spec=pltpu.PrefetchScalarGridSpec(
                num_scalar_prefetch=0,
                grid=(gm, gn),
                in_specs=[
                    pl.BlockSpec((tm, tk), lambda i, j: (i, 0)),   # x tile
                    pl.BlockSpec((tk, tn), lambda i, j: (0, j)),   # W tile
                    pl.BlockSpec((1, tn), lambda i, j: (0, j)),    # bias tile
                ],
                out_specs=pl.BlockSpec((tm, tn), lambda i, j: (i, j)),
            ),
            compiler_params=pltpu.CompilerParams(
                dimension_semantics=dims, vmem_limit_bytes=budget),
            cost_estimate=cost,
        )(x, w_t, b)
    else:
        kernel = functools.partial(_ff_kernel_multi_k, act=act,
                                   negative_slope=negative_slope)
        dims = ("arbitrary" if gm == 1 else "parallel", "parallel", "arbitrary")
        out = pl.pallas_call(
            kernel,
            out_shape=jax.ShapeDtypeStruct((M, Np), out_dtype),
            grid_spec=pltpu.PrefetchScalarGridSpec(
                num_scalar_prefetch=0,
                grid=(gm, gn, gk),
                in_specs=[
                    pl.BlockSpec((tm, tk), lambda i, j, k: (i, k)),   # x tile
                    pl.BlockSpec((tk, tn), lambda i, j, k: (k, j)),   # W tile
                    pl.BlockSpec((1, tn), lambda i, j, k: (0, j)),    # bias
                ],
                out_specs=pl.BlockSpec((tm, tn), lambda i, j, k: (i, j)),
                scratch_shapes=[pltpu.VMEM((tm, tn), jnp.float32)],
            ),
            compiler_params=pltpu.CompilerParams(
                dimension_semantics=dims, vmem_limit_bytes=budget),
            cost_estimate=cost,
        )(x, w_t, b)

    if Np != N:
        out = out[:, :N]
    return out


def init_linear_params(key, in_feat, out_feat):
    # Deterministic stand-in for nn.Linear.reset_parameters():
    # kaiming-uniform weight (a=sqrt(5)), uniform bias in +-1/sqrt(in_feat).
    kw, kb = jax.random.split(key)
    bound_w = jnp.sqrt(6.0 / in_feat)
    w_pt = jax.random.uniform(kw, (out_feat, in_feat), jnp.float32,
                              minval=-bound_w, maxval=bound_w)
    bound_b = 1.0 / jnp.sqrt(in_feat)
    bias = jax.random.uniform(kb, (out_feat,), jnp.float32,
                              minval=-bound_b, maxval=bound_b)
    return w_pt, bias


def _ref_forward(x, w_t, b, act, slope=0.01):
    y = x @ w_t + (b if b is not None else 0.0)
    if act == "relu":
        y = jnp.maximum(y, 0.0)
    elif act == "relu6":
        y = jnp.clip(y, 0.0, 6.0)
    elif act == "leaky":
        y = jnp.where(y >= 0.0, y, slope * y)
    return y


if __name__ == "__main__":
    ok = True

    # --- small shapes consistent with the module: batch=8, in=32, out=32 ---
    key = jax.random.PRNGKey(0)
    k_x, k_p = jax.random.split(key)
    batch, in_feat, out_feat = 8, 32, 32
    x = jax.random.normal(k_x, (batch, in_feat), jnp.float32)
    w_pt, bias = init_linear_params(k_p, in_feat, out_feat)
    ref_wt = w_pt.T
    ref_b = bias.reshape(1, out_feat)

    # f32 operands (prepared once): strict comparison vs reference.
    w32, b32, nf = prepare_ffn_params(w_pt, bias, dtype=jnp.float32)
    for act in (None, "relu", "relu6", "leaky"):
        out = jax.block_until_ready(
            feed_forward_layer(x, w32, b32, out_feat=nf, act=act))
        ref = _ref_forward(x, ref_wt, ref_b, act)
        ok = ok and bool(jnp.allclose(out, ref, atol=1e-5, rtol=1e-5))

    # no-bias path
    out_nb = jax.block_until_ready(
        feed_forward_layer(x, w32, None, out_feat=nf, act=None))
    ok = ok and bool(jnp.allclose(out_nb, x @ ref_wt, atol=1e-5, rtol=1e-5))

    # bf16 operands by default (prepared weights), f32 accumulation.
    wbf, bbf, nf = prepare_ffn_params(w_pt, bias)          # dtype=bf16 default
    out_bf = jax.block_until_ready(
        feed_forward_layer(x, wbf, bbf, out_feat=nf, act="relu"))
    ok = ok and bool(jnp.allclose(out_bf, _ref_forward(x, ref_wt, ref_b, "relu"),
                                  atol=2e-2, rtol=2e-2))

    # --- ragged shape, un-prepared weight fallback path (wrapper pads K/N) ---
    k_x2, k_p2 = jax.random.split(jax.random.PRNGKey(1))
    M2, K2, N2 = 300, 160, 200
    x2 = jax.random.normal(k_x2, (M2, K2), jnp.float32)
    w2, b2 = init_linear_params(k_p2, K2, N2)
    out2 = jax.block_until_ready(
        feed_forward_layer(x2, w2.T, b2.reshape(1, N2), act="relu"))
    ref2 = _ref_forward(x2, w2.T, b2.reshape(1, N2), "relu")
    ok = ok and bool(jnp.allclose(out2, ref2, atol=1e-4, rtol=1e-4))

    # --- multi-K-tile path (gk > 1) with bf16 operands / f32 accumulation ---
    k_x3, k_p3 = jax.random.split(jax.random.PRNGKey(2))
    M3, K3, N3 = 256, 2048, 512
    x3 = jax.random.normal(k_x3, (M3, K3), jnp.float32)
    w3, b3 = init_linear_params(k_p3, K3, N3)
    w3p, b3p, nf3 = prepare_ffn_params(w3, b3, dtype=jnp.bfloat16)
    out3 = jax.block_until_ready(
        feed_forward_layer(x3, w3p, b3p, out_feat=nf3, act="leaky",
                           tile_k=1024))
    ref3 = _ref_forward(x3, w3.T, b3.reshape(1, N3), "leaky")
    ok = ok and bool(jnp.allclose(out3, ref3, atol=0.5, rtol=5e-2))

    print("KERNEL_OK" if ok else "KERNEL_MISMATCH")
</pallas_src>

<mosaic_0001>
module attributes {stable_mosaic.version = 11 : i64} {
  func.func @_ff_kernel_single_k(%arg0: i32, %arg1: i32, %arg2: memref<8x128xf32, #tpu.memory_space<vmem>>, %arg3: memref<128x128xf32, #tpu.memory_space<vmem>>, %arg4: memref<1x128xf32, #tpu.memory_space<vmem>>, %arg5: memref<8x128xf32, #tpu.memory_space<vmem>>) attributes {dimension_semantics = [#tpu.dimension_semantics<arbitrary>, #tpu.dimension_semantics<parallel>], iteration_bounds = array<i64: 1, 1>, scalar_prefetch = 0 : i64, scratch_operands = 0 : i64, tpu.core_type = #tpu.core_type<tc>, window_params = [{transform_indices = @transform_0, window_bounds = array<i64: 8, 128>}, {transform_indices = @transform_1, window_bounds = array<i64: 128, 128>}, {transform_indices = @transform_2, window_bounds = array<i64: 1, 128>}, {transform_indices = @transform_3, window_bounds = array<i64: 8, 128>}]} {
    %c0 = arith.constant 0 : index
    %c0_0 = arith.constant 0 : index
    %0 = vector.load %arg2[%c0, %c0_0] : memref<8x128xf32, #tpu.memory_space<vmem>>, vector<8x128xf32>
    %c0_1 = arith.constant 0 : index
    %c0_2 = arith.constant 0 : index
    %1 = vector.load %arg3[%c0_1, %c0_2] : memref<128x128xf32, #tpu.memory_space<vmem>>, vector<128x128xf32>
    %cst = arith.constant dense<0.000000e+00> : vector<8x128xf32>
    %2 = tpu.matmul %0, %1, %cst {dimension_numbers = #tpu.dot_dimension_numbers<[1], [0], [0], [1], [0, 0, 1, 1], [], []>} : vector<8x128xf32>, vector<128x128xf32>, vector<8x128xf32> -> vector<8x128xf32>
    %c0_3 = arith.constant 0 : index
    %c0_4 = arith.constant 0 : index
    %3 = vector.load %arg4[%c0_3, %c0_4] : memref<1x128xf32, #tpu.memory_space<vmem>>, vector<1x128xf32>
    %4 = vector.broadcast %3 : vector<1x128xf32> to vector<8x128xf32>
    %5 = arith.addf %2, %4 : vector<8x128xf32>
    %c0_5 = arith.constant 0 : index
    %c0_6 = arith.constant 0 : index
    %6 = vector.load %arg5[%c0_5, %c0_6] : memref<8x128xf32, #tpu.memory_space<vmem>>, vector<8x128xf32>
    tpu.vector_store %arg5[%c0_5, %c0_6], %5 {strides = array<i32>} : memref<8x128xf32, #tpu.memory_space<vmem>>, vector<8x128xf32>,
    return
  }
  func.func @transform_0(%arg0: i32, %arg1: i32) -> (i32, i32) {
    %c0_i32 = arith.constant 0 : i32
    %c0_i32_0 = arith.constant 0 : i32
    return %arg0, %c0_i32 : i32, i32
  }
  func.func @transform_1(%arg0: i32, %arg1: i32) -> (i32, i32) {
    %c0_i32 = arith.constant 0 : i32
    %c0_i32_0 = arith.constant 0 : i32
    return %c0_i32, %arg1 : i32, i32
  }
  func.func @transform_2(%arg0: i32, %arg1: i32) -> (i32, i32) {
    %c0_i32 = arith.constant 0 : i32
    %c0_i32_0 = arith.constant 0 : i32
    return %c0_i32, %arg1 : i32, i32
  }
  func.func @transform_3(%arg0: i32, %arg1: i32) -> (i32, i32) {
    %c0_i32 = arith.constant 0 : i32
    return %arg0, %arg1 : i32, i32
  }
}

</mosaic_0001>

<llo_original>
// kernel: tpu_custom_call.1
$region0: #{tpu_custom_call.1}
  #allocation0 [shape = 'u32[]', space=smem, size = 0x4, offset = 0x4, fixed_abs, tag = 'smem constant byte address 0x4 - core index']
  #allocation1 [shape = 'u32[144,128]{1,0:T(1,128)}', space=vmem, size = 0x12000, scoped, tag = 'internal scratch']
  %s0 = inlined_call_operand.hbm [shape: f32[8,128], index: 0, kind: input, shape index: {}]
  %s1 = inlined_call_operand.hbm [shape: f32[128,128], index: 1, kind: input, shape index: {}]
  %s2 = inlined_call_operand.vmem [shape: f32[1,128], index: 2, kind: input, shape index: {}]
  %s3 = inlined_call_operand.hbm [shape: f32[8,128], index: 3, kind: output, shape index: {}]
  %s4 = sld [smem:[#allocation0]]
  $region30: #{tpu_custom_call.1} parent=0
    _
  %s6 = ssub.s32 1, %s4
  %s7 = scalar_select 0, %s6, %s4
  $region1: #{tpu_custom_call.1} parent=0
    #allocation2 [shape = 'u8[4096]{0}', space=vmem, size = 0x1000, scoped, tag = 'input window, operand 0, single buffered']
    #allocation3 [shape = 's32[1]{0}', space=sflag, size = 0x4, scoped, tag = 'scoped memory for tpu_custom_call.1']
    #allocation4 [shape = 's32[1]{0}', space=sflag, size = 0x4, scoped, tag = 'scoped memory for tpu_custom_call.1']
    #allocation5 [shape = 'u8[65536]{0}', space=vmem, size = 0x10000, scoped, tag = 'input window, operand 1, single buffered']
    #allocation6 [shape = 's32[1]{0}', space=sflag, size = 0x4, scoped, tag = 'scoped memory for tpu_custom_call.1']
    #allocation7 [shape = 'u8[4096]{0}', space=vmem, size = 0x1000, scoped, tag = 'output window, operand 0, single buffered']
    %8 = vsyncpa [#allocation3], 0
    %9 = vsyncpa [#allocation6], 0
    %10 = vsyncpa [#allocation4], 0
    // Predicated region
    $region2: #{tpu_custom_call.1} parent=1 // pred_check
      _
    $region3: #{tpu_custom_call.1} parent=1 // pred_check_branch
      %12 = sbr.rel (0) target = $region5
    $region4: #{tpu_custom_call.1} parent=1 // pred_region
      %s14 = ssub.s32 128, 128
      %15 = vsyncadd [#allocation3], %s14
      %s17 = sshll.u32 [#allocation2], 4
      %s18 = int_to_ptr.vmem [resolvable:$true] %s17
      %20 = dma.hbm_to_vmem [thread:$0]  %s0, 128, %s18, [#allocation3]
    $region5: #{tpu_custom_call.1} parent=1 // pred_fallthru
      _
    // Predicated region
    $region6: #{tpu_custom_call.1} parent=1 // pred_check
      _
    $region7: #{tpu_custom_call.1} parent=1 // pred_check_branch
      %22 = sbr.rel (0) target = $region9
    $region8: #{tpu_custom_call.1} parent=1 // pred_region
      %s24 = ssub.s32 2048, 2048
      %25 = vsyncadd [#allocation6], %s24
      %s26 = sshll.u32 [#allocation5], 4
      %s27 = int_to_ptr.vmem [resolvable:$true] %s26
      %32 = dma.hbm_to_vmem [thread:$0]  %s1, 2048, %s27, [#allocation6], 128, 128, 8
    $region9: #{tpu_custom_call.1} parent=1 // pred_fallthru
      _
    // Predicated region
    $region10: #{tpu_custom_call.1} parent=1 // pred_check
      _
    $region11: #{tpu_custom_call.1} parent=1 // pred_check_branch
      %34 = sbr.rel (0) target = $region13
    $region12: #{tpu_custom_call.1} parent=1 // pred_region
      _
    $region13: #{tpu_custom_call.1} parent=1 // pred_fallthru
      _
    // Predicated region
    $region14: #{tpu_custom_call.1} parent=1 // pred_check
      _
    $region15: #{tpu_custom_call.1} parent=1 // pred_check_branch
      %36 = sbr.rel (0) target = $region17
    $region16: #{tpu_custom_call.1} parent=1 // pred_region
      %37 = dma.done [#allocation3], 128
    $region17: #{tpu_custom_call.1} parent=1 // pred_fallthru
      _
    // Predicated region
    $region18: #{tpu_custom_call.1} parent=1 // pred_check
      _
    $region19: #{tpu_custom_call.1} parent=1 // pred_check_branch
      %39 = sbr.rel (0) target = $region21
    $region20: #{tpu_custom_call.1} parent=1 // pred_region
      %40 = dma.done [#allocation6], 2048
    $region21: #{tpu_custom_call.1} parent=1 // pred_fallthru
      _
    %v41 = vld [vmem:[#allocation2] sm:$0xff]
    %v42 = vld [vmem:[#allocation5] sm:$0xff]
    %v43 = vld [vmem:[#allocation5 + $0x8] sm:$0xff]
    %v44 = vld [vmem:[#allocation5 + $0x10] sm:$0xff]
    %v45 = vld [vmem:[#allocation5 + $0x18] sm:$0xff]
    %v46 = vld [vmem:[#allocation5 + $0x20] sm:$0xff]
    %v47 = vld [vmem:[#allocation5 + $0x28] sm:$0xff]
    %v48 = vld [vmem:[#allocation5 + $0x30] sm:$0xff]
    %v49 = vld [vmem:[#allocation5 + $0x38] sm:$0xff]
    %v50 = vld [vmem:[#allocation5 + $0x40] sm:$0xff]
    %v51 = vld [vmem:[#allocation5 + $0x48] sm:$0xff]
    %v52 = vld [vmem:[#allocation5 + $0x50] sm:$0xff]
    %v53 = vld [vmem:[#allocation5 + $0x58] sm:$0xff]
    %v54 = vld [vmem:[#allocation5 + $0x60] sm:$0xff]
    %v55 = vld [vmem:[#allocation5 + $0x68] sm:$0xff]
    %v56 = vld [vmem:[#allocation5 + $0x70] sm:$0xff]
    %v57 = vld [vmem:[#allocation5 + $0x78] sm:$0xff]
    %v58 = vld [vmem:[%s2] sm:$0x1]
    %v60 = vlaneseq
    %v61 = vshrl.u32 %v60, 7
    %v62 = vsub.s32 0, %v61
    %v63 = vrot.slane %v58, %v62
    %65 = vmatprep.subr.mxu0 0.0
    %66 = vmatpush1.msra.mxu0 %v42
    %67 = vmatprep.subr.mxu0 0.0
    %68 = vmatpush1.msra.mxu0 %v43
    %69 = vmatprep.subr.mxu0 0.0
    %70 = vmatpush1.msra.mxu0 %v44
    %71 = vmatprep.subr.mxu0 0.0
    %72 = vmatpush1.msra.mxu0 %v45
    %73 = vmatprep.subr.mxu0 0.0
    %74 = vmatpush1.msra.mxu0 %v46
    %75 = vmatprep.subr.mxu0 0.0
    %76 = vmatpush1.msra.mxu0 %v47
    %77 = vmatprep.subr.mxu0 0.0
    %78 = vmatpush1.msra.mxu0 %v48
    %79 = vmatprep.subr.mxu0 0.0
    %80 = vmatpush1.msra.mxu0 %v49
    %81 = vmatprep.subr.mxu0 0.0
    %82 = vmatpush1.msra.mxu0 %v50
    %83 = vmatprep.subr.mxu0 0.0
    %84 = vmatpush1.msra.mxu0 %v51
    %85 = vmatprep.subr.mxu0 0.0
    %86 = vmatpush1.msra.mxu0 %v52
    %87 = vmatprep.subr.mxu0 0.0
    %88 = vmatpush1.msra.mxu0 %v53
    %89 = vmatprep.subr.mxu0 0.0
    %90 = vmatpush1.msra.mxu0 %v54
    %91 = vmatprep.subr.mxu0 0.0
    %92 = vmatpush1.msra.mxu0 %v55
    %93 = vmatprep.subr.mxu0 0.0
    %94 = vmatpush1.msra.mxu0 %v56
    %95 = vmatprep.subr.mxu0 0.0
    %96 = vmatpush1.msra.mxu0 %v57
    %97 = vmatprep.subr.mxu0 0.0
    %98 = vmatpush1.msra.mxu0 0.0
    %99 = vmatprep.subr.mxu0 0.0
    %100 = vmatpush1.msra.mxu0 0.0
    %101 = vmatprep.subr.mxu0 0.0
    %102 = vmatpush1.msra.mxu0 0.0
    %103 = vmatprep.subr.mxu0 0.0
    %104 = vmatpush1.msra.mxu0 0.0
    %105 = vmatprep.subr.mxu0 0.0
    %106 = vmatpush1.msra.mxu0 0.0
    %107 = vmatprep.subr.mxu0 0.0
    %108 = vmatpush1.msra.mxu0 0.0
    %109 = vmatprep.subr.mxu0 0.0
    %110 = vmatpush1.msra.mxu0 0.0
    %111 = vmatprep.subr.mxu0 0.0
    %112 = vmatpush1.msra.mxu0 0.0
    %113 = vmatprep.subr.mxu0 0.0
    %114 = vmatpush1.msra.mxu0 0.0
    %115 = vmatprep.subr.mxu0 0.0
    %116 = vmatpush1.msra.mxu0 0.0
    %117 = vmatprep.subr.mxu0 0.0
    %118 = vmatpush1.msra.mxu0 0.0
    %119 = vmatprep.subr.mxu0 0.0
    %120 = vmatpush1.msra.mxu0 0.0
    %121 = vmatprep.subr.mxu0 0.0
    %122 = vmatpush1.msra.mxu0 0.0
    %123 = vmatprep.subr.mxu0 0.0
    %124 = vmatpush1.msra.mxu0 0.0
    %125 = vmatprep.subr.mxu0 0.0
    %126 = vmatpush1.msra.mxu0 0.0
    %127 = vmatprep.subr.mxu0 0.0
    %128 = vmatpush1.msra.mxu0 0.0
    %129 = vmatprep.mubr.f32.mxu0 0.0
    %130 = vmatmul.mubr.f32.gmra.mrb[0].mxu0 %v41
    %v131 = vpop.f32.mrb[0].mxu0
    %v132 = vadd.f32 %v63, %v131
    %v133 = vpop.f32.mrb[0].mxu0
    %134 = vdwg.mxu0
    %135 = vst [vmem:[#allocation7] sm:$0xff] %v132
    // Predicated region
    $region22: #{tpu_custom_call.1} parent=1 // pred_check
      _
    $region23: #{tpu_custom_call.1} parent=1 // pred_check_branch
      %137 = sbr.rel (0) target = $region25
    $region24: #{tpu_custom_call.1} parent=1 // pred_region
      %s139 = ssub.s32 128, 128
      %140 = vsyncadd [#allocation4], %s139
      %s142 = sshll.u32 [#allocation7], 4
      %s143 = int_to_ptr.vmem [resolvable:$true] %s142
      %145 = dma.vmem_to_hbm [thread:$0]  %s143, 128, %s3, [#allocation4]
    $region25: #{tpu_custom_call.1} parent=1 // pred_fallthru
      _
    // Predicated region
    $region26: #{tpu_custom_call.1} parent=1 // pred_check
      _
    $region27: #{tpu_custom_call.1} parent=1 // pred_check_branch
      %147 = sbr.rel (0) target = $region29
    $region28: #{tpu_custom_call.1} parent=1 // pred_region
      %148 = dma.done [#allocation4], 128
    $region29: #{tpu_custom_call.1} parent=1 // pred_fallthru
      _
    %149 = vsyncpa [#allocation3], 1
    %150 = vsyncpa [#allocation6], 1
    %151 = vsyncpa [#allocation4], 1

</llo_original>
